<compile_context>
chip_gen: v5e
topology: v5e:2x2
jax: 0.10.0
libtpu: 0.0.40
codegen_flags: <defaults>
</compile_context>

<pallas_src>
import functools
import math

import jax
import jax.numpy as jnp
from jax.experimental import pallas as pl
from jax.experimental.pallas import tpu as pltpu


_TS_MAX = 32768   # cap on the lane (spatial) tile for the channels-first kernel
_TM_MAX = 16384   # cap on the sublane (row) tile for the 2-D kernel
_F32_LIVE = 6     # approx. live f32 copies of one tile inside the kernel (VMEM budgeting)


def _round_up(a, b):
    return (a + b - 1) // b * b


def _cdiv(a, b):
    return -(-a // b)


def _vmem_budget():
    """(data budget for one pipelined tile, explicit scoped-VMEM limit), generation-gated."""
    try:
        cap = pltpu.get_tpu_info().vmem_capacity_bytes
    except Exception:
        cap = 64 << 20                     # be conservative (v7x-sized) if the query fails
    if cap >= (100 << 20):                 # v5e / v6e: 128 MiB VMEM per core
        return 40 << 20, 96 << 20
    return 20 << 20, 48 << 20              # v7x: 64 MiB per core, keep >= 16 MiB headroom


def _choose_ts(s, c, itemsize, budget, override=None):
    """Spatial (lane) tile for the channels-first kernel."""
    if override is not None:
        ts = int(override)
    else:
        c_sub = _round_up(c, 8)            # class axis lives on (8-padded) sublanes
        bytes_per_col = c_sub * (2 * itemsize + 4 * _F32_LIVE)
        ts = budget // bytes_per_col
    ts = max(128, min(ts, _TS_MAX))
    if ts >= s:
        return s                           # full dim: always a legal block shape
    return (ts // 128) * 128               # otherwise lane dim must be a multiple of 128


def _choose_tm(m, c, itemsize, budget, override=None):
    """Row (sublane) tile for the 2-D kernel."""
    if override is not None:
        tm = int(override)
    else:
        c_lane = _round_up(c, 128)         # class axis lives on (128-padded) lanes
        bytes_per_row = c_lane * (2 * itemsize + 4 * _F32_LIVE)
        tm = budget // bytes_per_row
    tm = max(8, min(tm, _TM_MAX))
    if tm >= m:
        return m                           # full dim: always a legal block shape
    return (tm // 8) * 8                   # otherwise sublane dim must be a multiple of 8


def _focal_term(one_minus_pt, gamma):
    """(1 - pt)**gamma; small integer gammas via repeated multiply (VPU) instead of EUP pow."""
    gi = int(gamma)
    if float(gi) == gamma and 0 < gi <= 8:
        r = one_minus_pt
        for _ in range(gi - 1):
            r = r * one_minus_pt
        return r
    # general case: exp(gamma * log(x)); x is clamped >= 0 by the caller; x == 0 -> 0.
    return jnp.exp(jnp.float32(gamma) * jnp.log(one_minus_pt))


def _tile_loss(x, y, alpha, in_bounds, *, class_axis, gamma, ignore_index):
    """Per-element focal loss for one tile.

    x: 2-D logits tile, class axis = `class_axis` (0: (C, T) channels-first; 1: (T, C)).
    y: int32 labels with a size-1 class axis ((1, T) or (T, 1)).
    alpha: per-class weights broadcastable to x, or None (fast path, weight == 1).
    in_bounds: bool mask (same shape as y) for rows/cols of a partial edge tile.
    The in-bounds/valid mask gates the FINAL select, so garbage (NaN/Inf) logits or labels
    in the out-of-bounds region of a partial block contribute exactly 0.
    """
    x = x.astype(jnp.float32)

    xmax = jnp.max(x, axis=class_axis, keepdims=True)
    shifted = x - xmax
    lse = jnp.log(jnp.sum(jnp.exp(shifted), axis=class_axis, keepdims=True))

    # fused "gathers": one one-hot mask, masked reduces (no dynamic gather across lanes)
    cls = jax.lax.broadcasted_iota(jnp.int32, x.shape, class_axis)
    sel = cls == y
    shifted_y = jnp.sum(jnp.where(sel, shifted, 0.0), axis=class_axis, keepdims=True)
    log_pt = shifted_y - lse                                   # <= 0 (up to rounding)

    if alpha is None:
        ce = -log_pt
    else:
        alpha_b = jnp.broadcast_to(alpha.astype(jnp.float32), x.shape)
        alpha_y = jnp.sum(jnp.where(sel, alpha_b, 0.0), axis=class_axis, keepdims=True)
        ce = -alpha_y * log_pt

    if gamma != 0.0:
        pt = jnp.exp(log_pt)
        one_minus_pt = jnp.maximum(1.0 - pt, 0.0)              # clamp: log_pt may round > 0
        ce = _focal_term(one_minus_pt, gamma) * ce

    valid = (y != ignore_index) & in_bounds
    return jnp.where(valid, ce, 0.0)


def _cf_kernel(*refs, gamma, ignore_index, s_total, has_alpha, accumulate):
    """Channels-first tile: x (C, ts) classes-on-sublanes, y (1, ts), out (1, ts)."""
    if has_alpha:
        alpha_ref, x_ref, y_ref, out_ref = refs
        alpha = alpha_ref[...]
    else:
        x_ref, y_ref, out_ref = refs
        alpha = None

    si = pl.program_id(1)
    ts = y_ref.shape[-1]
    col = si * ts + jax.lax.broadcasted_iota(jnp.int32, (1, ts), 1)
    in_bounds = col < s_total

    loss = _tile_loss(x_ref[...], y_ref[...], alpha, in_bounds,
                      class_axis=0, gamma=gamma, ignore_index=ignore_index)

    if accumulate:
        @pl.when(si == 0)
        def _():
            out_ref[...] = jnp.zeros_like(out_ref)
        out_ref[...] = out_ref[...] + loss                      # lane-dense resident acc
    else:
        out_ref[...] = loss                                     # lane-dense per-element out


def _rows_kernel(*refs, gamma, ignore_index, m_total, has_alpha, accumulate):
    """2-D tile: x (tm, C) classes-on-lanes, y (tm, 1), out (tm, 1)."""
    if has_alpha:
        alpha_ref, x_ref, y_ref, out_ref = refs
        alpha = alpha_ref[...]
    else:
        x_ref, y_ref, out_ref = refs
        alpha = None

    i = pl.program_id(0)
    tm = y_ref.shape[0]
    row = i * tm + jax.lax.broadcasted_iota(jnp.int32, (tm, 1), 0)
    in_bounds = row < m_total

    loss = _tile_loss(x_ref[...], y_ref[...], alpha, in_bounds,
                      class_axis=1, gamma=gamma, ignore_index=ignore_index)

    if accumulate:
        @pl.when(i == 0)
        def _():
            out_ref[...] = jnp.zeros_like(out_ref)
        out_ref[...] = out_ref[...] + loss
    else:
        out_ref[...] = loss


def focal_loss(x, y, alpha=None, gamma=0.0, reduction="mean", ignore_index=-100, block=None):
    """JAX/Pallas equivalent of FocalLoss.forward.  `block` optionally overrides the tile size."""
    if reduction not in ("mean", "sum", "none"):
        raise ValueError('Reduction must be one of: "mean", "sum", "none".')

    gamma = float(gamma)
    ignore_index = int(ignore_index)
    has_alpha = alpha is not None
    accumulate = reduction != "none"
    budget, vmem_limit = _vmem_budget()
    c = x.shape[1]
    itemsize = jnp.dtype(x.dtype).itemsize

    if x.ndim > 2:
        # -------- channels-first path: (N, C, d1..dK) -> (N, C, S) view, no HBM transpose ----
        n = x.shape[0]
        s = math.prod(x.shape[2:])
        total = n * s
        x3 = x.reshape(n, c, s)                                  # free view, dtype preserved
        y3 = jnp.asarray(y, jnp.int32).reshape(n, 1, s)
        ts = _choose_ts(s, c, itemsize, budget, block)
        steps = _cdiv(s, ts)

        kernel = functools.partial(_cf_kernel, gamma=gamma, ignore_index=ignore_index,
                                   s_total=s, has_alpha=has_alpha, accumulate=accumulate)

        args, in_specs = [], []
        if has_alpha:
            args.append(jnp.asarray(alpha, jnp.float32).reshape(c, 1))
            in_specs.append(pl.BlockSpec((c, 1), lambda ni, si: (0, 0)))
        args += [x3, y3]
        in_specs += [
            pl.BlockSpec((None, c, ts), lambda ni, si: (ni, 0, si)),   # logits tile (C, ts)
            pl.BlockSpec((None, 1, ts), lambda ni, si: (ni, 0, si)),   # labels tile (1, ts)
        ]
        if accumulate:
            out_shape = jax.ShapeDtypeStruct((n, 1, ts), jnp.float32)
            out_spec = pl.BlockSpec((None, 1, ts), lambda ni, si: (ni, 0, 0))  # resident acc
        else:
            out_shape = jax.ShapeDtypeStruct((n, 1, s), jnp.float32)
            out_spec = pl.BlockSpec((None, 1, ts), lambda ni, si: (ni, 0, si))

        out = pl.pallas_call(
            kernel,
            out_shape=out_shape,
            grid_spec=pltpu.PrefetchScalarGridSpec(
                num_scalar_prefetch=0,
                grid=(n, steps),
                in_specs=in_specs,
                out_specs=out_spec,
            ),
            compiler_params=pltpu.CompilerParams(
                dimension_semantics=("parallel", "arbitrary"),
                vmem_limit_bytes=vmem_limit,
            ),
        )(*args)

        if reduction == "none":
            return out.reshape(total)        # matches torch: flat (M,) per-element loss
        loss_sum = jnp.sum(out)
        if reduction == "mean":
            return loss_sum / jnp.float32(total)   # mean over ALL elements (as in the module)
        return loss_sum

    # ------------ 2-D path: x (M, C), class axis on lanes -------------------------------------
    m = x.shape[0]
    y2 = jnp.asarray(y, jnp.int32).reshape(m, 1)
    tm = _choose_tm(m, c, itemsize, budget, block)
    nblocks = _cdiv(m, tm)

    kernel = functools.partial(_rows_kernel, gamma=gamma, ignore_index=ignore_index,
                               m_total=m, has_alpha=has_alpha, accumulate=accumulate)

    args, in_specs = [], []
    if has_alpha:
        args.append(jnp.asarray(alpha, jnp.float32).reshape(1, c))
        in_specs.append(pl.BlockSpec((1, c), lambda i: (0, 0)))
    args += [x, y2]
    in_specs += [
        pl.BlockSpec((tm, c), lambda i: (i, 0)),
        pl.BlockSpec((tm, 1), lambda i: (i, 0)),
    ]
    if accumulate:
        out_shape = jax.ShapeDtypeStruct((tm, 1), jnp.float32)
        out_spec = pl.BlockSpec((tm, 1), lambda i: (0, 0))       # resident accumulator
        semantics = ("arbitrary",)
    else:
        out_shape = jax.ShapeDtypeStruct((m, 1), jnp.float32)
        out_spec = pl.BlockSpec((tm, 1), lambda i: (i, 0))
        semantics = ("parallel",)

    out = pl.pallas_call(
        kernel,
        out_shape=out_shape,
        grid_spec=pltpu.PrefetchScalarGridSpec(
            num_scalar_prefetch=0,
            grid=(nblocks,),
            in_specs=in_specs,
            out_specs=out_spec,
        ),
        compiler_params=pltpu.CompilerParams(
            dimension_semantics=semantics,
            vmem_limit_bytes=vmem_limit,
        ),
    )(*args)

    if reduction == "none":
        return out[:, 0]
    loss_sum = jnp.sum(out)
    if reduction == "mean":
        return loss_sum / jnp.float32(m)
    return loss_sum


def _focal_loss_ref(x, y, alpha, gamma, reduction, ignore_index):
    """Pure-JAX reference mirroring the PyTorch module line by line."""
    if x.ndim > 2:
        c = x.shape[1]
        x = jnp.moveaxis(x, 1, -1).reshape(-1, c)
        y = y.reshape(-1)
    log_p = jax.nn.log_softmax(x, axis=-1)
    safe_y = jnp.where(y == ignore_index, 0, y)
    log_pt = jnp.take_along_axis(log_p, safe_y[:, None], axis=1)[:, 0]
    valid = (y != ignore_index).astype(jnp.float32)
    ce = -alpha[safe_y] * log_pt * valid
    pt = jnp.exp(log_pt)
    loss = (1.0 - pt) ** gamma * ce
    if reduction == "mean":
        return loss.mean()
    elif reduction == "sum":
        return loss.sum()
    return loss


if __name__ == "__main__":
    key = jax.random.PRNGKey(0)
    ks = jax.random.split(key, 10)

    # 1) (N, C, H, W), mean reduction, integer gamma, alpha, forced 2-step spatial tiling
    x1 = jax.random.normal(ks[0], (2, 4, 16, 16), dtype=jnp.float32)
    y1 = jax.random.randint(ks[1], (2, 16, 16), 0, 4, dtype=jnp.int32)
    a1 = jnp.array([0.25, 0.5, 0.75, 1.0], jnp.float32)
    out1 = jax.block_until_ready(focal_loss(x1, y1, a1, gamma=2.0, reduction="mean", block=128))
    ref1 = _focal_loss_ref(x1, y1, a1, 2.0, "mean", -100)
    assert jnp.allclose(out1, ref1, rtol=1e-5, atol=1e-5), (out1, ref1)

    # 2) sum reduction, fractional gamma, ignore_index rows, spatial dim not 128-aligned
    x2 = jax.random.normal(ks[2], (3, 5, 5, 7), dtype=jnp.float32)
    y2 = jax.random.randint(ks[3], (3, 5, 7), 0, 5, dtype=jnp.int32)
    y2 = y2.at[0, 0, :3].set(-100)
    a2 = jnp.array([0.1, 0.2, 0.3, 0.4, 0.5], jnp.float32)
    out2 = jax.block_until_ready(focal_loss(x2, y2, a2, gamma=1.5, reduction="sum"))
    ref2 = _focal_loss_ref(x2, y2, a2, 1.5, "sum", -100)
    assert jnp.allclose(out2, ref2, rtol=1e-5, atol=1e-5), (out2, ref2)

    # 3) 2-D input, reduction='none', gamma=0 (plain weighted CE), ragged last row tile
    x3 = jax.random.normal(ks[4], (10, 4), dtype=jnp.float32)
    y3 = jax.random.randint(ks[5], (10,), 0, 4, dtype=jnp.int32)
    a3 = jnp.array([1.0, 2.0, 0.5, 1.5], jnp.float32)
    out3 = jax.block_until_ready(focal_loss(x3, y3, a3, gamma=0.0, reduction="none", block=8))
    ref3 = _focal_loss_ref(x3, y3, a3, 0.0, "none", -100)
    assert out3.shape == ref3.shape, (out3.shape, ref3.shape)
    assert jnp.allclose(out3, ref3, rtol=1e-5, atol=1e-6), (out3, ref3)

    # 4) channels-first 'none', alpha=None fast path, ragged spatial tile (S=200, ts=128)
    x4 = jax.random.normal(ks[6], (2, 4, 10, 20), dtype=jnp.float32)
    y4 = jax.random.randint(ks[7], (2, 10, 20), 0, 4, dtype=jnp.int32)
    out4 = jax.block_until_ready(focal_loss(x4, y4, None, gamma=1.0, reduction="none", block=128))
    ref4 = _focal_loss_ref(x4, y4, jnp.ones((4,), jnp.float32), 1.0, "none", -100)
    assert out4.shape == ref4.shape, (out4.shape, ref4.shape)
    assert jnp.allclose(out4, ref4, rtol=1e-5, atol=1e-6), (out4, ref4)

    # 5) 2-D sum, alpha=None, ignore_index, ragged last row tile across 3 grid steps
    x5 = jax.random.normal(ks[8], (37, 6), dtype=jnp.float32)
    y5 = jax.random.randint(ks[9], (37,), 0, 6, dtype=jnp.int32)
    y5 = y5.at[5].set(-100)
    out5 = jax.block_until_ready(focal_loss(x5, y5, None, gamma=2.0, reduction="sum", block=16))
    ref5 = _focal_loss_ref(x5, y5, jnp.ones((6,), jnp.float32), 2.0, "sum", -100)
    assert jnp.allclose(out5, ref5, rtol=1e-5, atol=1e-5), (out5, ref5)

    print("KERNEL_OK")
</pallas_src>

<mosaic_0001>
module attributes {stable_mosaic.version = 11 : i64} {
  func.func @_cf_kernel(%arg0: i32, %arg1: i32, %arg2: memref<4x1xf32, #tpu.memory_space<vmem>>, %arg3: memref<1x4x128xf32, #tpu.memory_space<vmem>>, %arg4: memref<1x1x128xi32, #tpu.memory_space<vmem>>, %arg5: memref<1x1x128xf32, #tpu.memory_space<vmem>>) attributes {dimension_semantics = [#tpu.dimension_semantics<parallel>, #tpu.dimension_semantics<arbitrary>], iteration_bounds = array<i64: 2, 2>, scalar_prefetch = 0 : i64, scratch_operands = 0 : i64, tpu.core_type = #tpu.core_type<tc>, window_params = [{pipeline_mode = #tpu.pipeline_mode<synchronous>, transform_indices = @transform_0, window_bounds = array<i64: 4, 1>}, {transform_indices = @transform_1, window_bounds = array<i64: 1, 4, 128>}, {transform_indices = @transform_2, window_bounds = array<i64: 1, 1, 128>}, {transform_indices = @transform_3, window_bounds = array<i64: 1, 1, 128>}]} {
    %c0 = arith.constant 0 : index
    %c0_0 = arith.constant 0 : index
    %0 = vector.load %arg2[%c0, %c0_0] : memref<4x1xf32, #tpu.memory_space<vmem>>, vector<4x1xf32>
    %c128_i32 = arith.constant 128 : i32
    %1 = arith.muli %arg1, %c128_i32 : i32
    %2 = tpu.iota {dimensions = array<i32: 1>} : vector<1x128xi32>
    %3 = vector.broadcast %1 : i32 to vector<1x128xi32>
    %4 = arith.addi %3, %2 : vector<1x128xi32>
    %c256_i32 = arith.constant 256 : i32
    %5 = vector.broadcast %c256_i32 : i32 to vector<1x128xi32>
    %6 = arith.cmpi slt, %4, %5 : vector<1x128xi32>
    %c0_1 = arith.constant 0 : index
    %c0_2 = arith.constant 0 : index
    %c0_3 = arith.constant 0 : index
    %7 = vector.load %arg3[%c0_1, %c0_2, %c0_3] : memref<1x4x128xf32, #tpu.memory_space<vmem>>, vector<1x4x128xf32>
    %8 = vector.shape_cast %7 : vector<1x4x128xf32> to vector<4x128xf32>
    %c0_4 = arith.constant 0 : index
    %c0_5 = arith.constant 0 : index
    %c0_6 = arith.constant 0 : index
    %9 = vector.load %arg4[%c0_4, %c0_5, %c0_6] : memref<1x1x128xi32, #tpu.memory_space<vmem>>, vector<1x1x128xi32>
    %10 = vector.shape_cast %9 : vector<1x1x128xi32> to vector<1x128xi32>
    %cst = arith.constant dense<0xFF800000> : vector<128xf32>
    %11 = vector.multi_reduction <maximumf>, %8, %cst [0] : vector<4x128xf32> to vector<128xf32>
    %12 = vector.shape_cast %11 : vector<128xf32> to vector<1x128xf32>
    %13 = vector.broadcast %12 : vector<1x128xf32> to vector<4x128xf32>
    %14 = arith.subf %8, %13 : vector<4x128xf32>
    %15 = math.exp %14 : vector<4x128xf32>
    %cst_7 = arith.constant dense<0.000000e+00> : vector<128xf32>
    %16 = vector.multi_reduction <add>, %15, %cst_7 [0] : vector<4x128xf32> to vector<128xf32>
    %17 = vector.shape_cast %16 : vector<128xf32> to vector<1x128xf32>
    %18 = math.log %17 : vector<1x128xf32>
    %19 = tpu.iota {dimensions = array<i32: 0>} : vector<4x128xi32>
    %20 = vector.broadcast %10 : vector<1x128xi32> to vector<4x128xi32>
    %21 = arith.cmpi eq, %19, %20 : vector<4x128xi32>
    %cst_8 = arith.constant 0.000000e+00 : f32
    %22 = vector.broadcast %cst_8 : f32 to vector<4x128xf32>
    %23 = arith.select %21, %14, %22 : vector<4x128xi1>, vector<4x128xf32>
    %cst_9 = arith.constant dense<0.000000e+00> : vector<128xf32>
    %24 = vector.multi_reduction <add>, %23, %cst_9 [0] : vector<4x128xf32> to vector<128xf32>
    %25 = vector.shape_cast %24 : vector<128xf32> to vector<1x128xf32>
    %26 = arith.subf %25, %18 : vector<1x128xf32>
    %27 = vector.shape_cast %0 : vector<4x1xf32> to vector<4x1xf32>
    %28 = vector.broadcast %27 : vector<4x1xf32> to vector<4x128xf32>
    %cst_10 = arith.constant 0.000000e+00 : f32
    %29 = vector.broadcast %cst_10 : f32 to vector<4x128xf32>
    %30 = arith.select %21, %28, %29 : vector<4x128xi1>, vector<4x128xf32>
    %cst_11 = arith.constant dense<0.000000e+00> : vector<128xf32>
    %31 = vector.multi_reduction <add>, %30, %cst_11 [0] : vector<4x128xf32> to vector<128xf32>
    %32 = vector.shape_cast %31 : vector<128xf32> to vector<1x128xf32>
    %cst_12 = arith.constant 0.000000e+00 : f32
    %33 = vector.broadcast %cst_12 : f32 to vector<1x128xf32>
    %34 = arith.subf %33, %32 : vector<1x128xf32>
    %35 = arith.mulf %34, %26 : vector<1x128xf32>
    %36 = math.exp %26 : vector<1x128xf32>
    %cst_13 = arith.constant 1.000000e+00 : f32
    %37 = vector.broadcast %cst_13 : f32 to vector<1x128xf32>
    %38 = arith.subf %37, %36 : vector<1x128xf32>
    %cst_14 = arith.constant 0.000000e+00 : f32
    %39 = vector.broadcast %cst_14 : f32 to vector<1x128xf32>
    %40 = arith.maximumf %38, %39 : vector<1x128xf32>
    %41 = arith.mulf %40, %40 : vector<1x128xf32>
    %42 = arith.mulf %41, %35 : vector<1x128xf32>
    %c-100_i32 = arith.constant -100 : i32
    %43 = vector.broadcast %c-100_i32 : i32 to vector<1x128xi32>
    %44 = arith.cmpi ne, %10, %43 : vector<1x128xi32>
    %45 = arith.andi %44, %6 : vector<1x128xi1>
    %cst_15 = arith.constant 0.000000e+00 : f32
    %46 = vector.broadcast %cst_15 : f32 to vector<1x128xf32>
    %47 = arith.select %45, %42, %46 : vector<1x128xi1>, vector<1x128xf32>
    %c0_i32 = arith.constant 0 : i32
    %48 = arith.cmpi eq, %arg1, %c0_i32 : i32
    %49 = arith.extui %48 : i1 to i32
    %c0_i32_16 = arith.constant 0 : i32
    %50 = arith.cmpi ne, %49, %c0_i32_16 : i32
    scf.if %50 {
      %cst_23 = arith.constant 0.000000e+00 : f32
      %57 = vector.broadcast %cst_23 : f32 to vector<1x128xf32>
      %c0_24 = arith.constant 0 : index
      %c0_25 = arith.constant 0 : index
      %c0_26 = arith.constant 0 : index
      %58 = vector.load %arg5[%c0_24, %c0_25, %c0_26] : memref<1x1x128xf32, #tpu.memory_space<vmem>>, vector<1x1x128xf32>
      %59 = vector.shape_cast %58 : vector<1x1x128xf32> to vector<1x128xf32>
      %60 = vector.shape_cast %57 : vector<1x128xf32> to vector<1x1x128xf32>
      tpu.vector_store %arg5[%c0_24, %c0_25, %c0_26], %60 {strides = array<i32>} : memref<1x1x128xf32, #tpu.memory_space<vmem>>, vector<1x1x128xf32>,
    } else {
    }
    %c0_17 = arith.constant 0 : index
    %c0_18 = arith.constant 0 : index
    %c0_19 = arith.constant 0 : index
    %51 = vector.load %arg5[%c0_17, %c0_18, %c0_19] : memref<1x1x128xf32, #tpu.memory_space<vmem>>, vector<1x1x128xf32>
    %52 = vector.shape_cast %51 : vector<1x1x128xf32> to vector<1x128xf32>
    %53 = arith.addf %52, %47 : vector<1x128xf32>
    %c0_20 = arith.constant 0 : index
    %c0_21 = arith.constant 0 : index
    %c0_22 = arith.constant 0 : index
    %54 = vector.load %arg5[%c0_20, %c0_21, %c0_22] : memref<1x1x128xf32, #tpu.memory_space<vmem>>, vector<1x1x128xf32>
    %55 = vector.shape_cast %54 : vector<1x1x128xf32> to vector<1x128xf32>
    %56 = vector.shape_cast %53 : vector<1x128xf32> to vector<1x1x128xf32>
    tpu.vector_store %arg5[%c0_20, %c0_21, %c0_22], %56 {strides = array<i32>} : memref<1x1x128xf32, #tpu.memory_space<vmem>>, vector<1x1x128xf32>,
    return
  }
  func.func @transform_0(%arg0: i32, %arg1: i32) -> (i32, i32) {
    %c0_i32 = arith.constant 0 : i32
    %c0_i32_0 = arith.constant 0 : i32
    %c0_i32_1 = arith.constant 0 : i32
    return %c0_i32, %c0_i32_0 : i32, i32
  }
  func.func @transform_1(%arg0: i32, %arg1: i32) -> (i32, i32, i32) {
    %c0_i32 = arith.constant 0 : i32
    %c0_i32_0 = arith.constant 0 : i32
    return %arg0, %c0_i32, %arg1 : i32, i32, i32
  }
  func.func @transform_2(%arg0: i32, %arg1: i32) -> (i32, i32, i32) {
    %c0_i32 = arith.constant 0 : i32
    %c0_i32_0 = arith.constant 0 : i32
    return %arg0, %c0_i32, %arg1 : i32, i32, i32
  }
  func.func @transform_3(%arg0: i32, %arg1: i32) -> (i32, i32, i32) {
    %c0_i32 = arith.constant 0 : i32
    %c0_i32_0 = arith.constant 0 : i32
    %c0_i32_1 = arith.constant 0 : i32
    return %arg0, %c0_i32, %c0_i32_0 : i32, i32, i32
  }
}

</mosaic_0001>

<llo_original>
// kernel: tpu_custom_call.1
$region0: #{tpu_custom_call.1}
  #allocation0 [shape = 'u32[]', space=smem, size = 0x4, offset = 0x4, fixed_abs, tag = 'smem constant byte address 0x4 - core index']
  #allocation1 [shape = 'u32[72,128]{1,0:T(1,128)}', space=vmem, size = 0x9000, scoped, tag = 'internal scratch']
  %s0 = inlined_call_operand.vmem [shape: f32[4,1], index: 0, kind: input, shape index: {}]
  %s1 = inlined_call_operand.hbm [shape: f32[2,4,256], index: 1, kind: input, shape index: {}]
  %s2 = inlined_call_operand.vmem [shape: s32[2,1,256], index: 2, kind: input, shape index: {}]
  %s3 = inlined_call_operand.hbm [shape: f32[2,1,128], index: 3, kind: output, shape index: {}]
  %s4 = sld [smem:[#allocation0]]
  $region53: #{tpu_custom_call.1} parent=0
    _
  %s6 = ssub.s32 1, %s4
  %s7 = scalar_select 0, %s6, %s4
  $region1: #{tpu_custom_call.1} parent=0
    #allocation2 [shape = 'u8[4096]{0}', space=vmem, size = 0x1000, scoped, tag = 'input window, operand 1']
    #allocation3 [shape = 's32[2]{0}', space=sflag, size = 0x8, scoped, tag = 'scoped memory for tpu_custom_call.1']
    #allocation4 [shape = 's32[2]{0}', space=sflag, size = 0x8, scoped, tag = 'scoped memory for tpu_custom_call.1']
    #allocation5 [shape = 'u8[1024]{0}', space=vmem, size = 0x400, scoped, tag = 'output window, operand 0']
    %8 = vsyncpa [#allocation3], 0
    %s9 = scalar_lea.sflag [#allocation3], 1
    %10 = vsyncpa %s9, 0
    %11 = vsyncpa [#allocation4], 0
    %s12 = scalar_lea.sflag [#allocation4], 1
    %13 = vsyncpa %s12, 0
    loop: start=0, step=1, limit=6
    $region2: #{tpu_custom_call.1} parent=1 // loop_pre_header
      _
    $region3: #{tpu_custom_call.1} parent=1 // loop_header
      %s15 = sphi 0, %s19
      %p16 = scmp.ge.s32.totalorder %s15, 6
      %s22 = sphi 0, %s34
      %s23 = sphi 0, %s30
      %s24 = sphi 0, %s22
      %s25 = sphi 0, %s23
      %s26 = sphi 0, %s24
      %s27 = sphi 0, %s25
      %s35 = sphi 0, %s35
      %s37 = sphi 0, %s35
      %s38 = sphi 0, %s37
      %s52 = sphi 0, %s38
      %s60 = sphi 0, %s62
      %s63 = sphi 0, %s60
      %s64 = sphi 0, %s63
      %s80 = sphi 0, %s64
      %s88 = sphi 0, %s90
      %s91 = sphi 0, %s88
      %s92 = sphi 0, %s91
      %s108 = sphi 0, %s92
      %s114 = sphi 0, %s116
      %s117 = sphi 0, %s114
      %s118 = sphi 0, %s117
      %s134 = sphi 0, %s118
    $region4: #{tpu_custom_call.1} parent=1 // loop_header_branch
      %18 = sbr.rel (%p16) target = $region8
    $region5: #{tpu_custom_call.1} parent=1 // loop_body
      %s20 = ssub.s32 %s15, 1
      %s21 = ssub.s32 %s15, 2
      %s28 = sadd.s32 1, %s23
      %p29 = scmp.ge.s32.totalorder %s28, 2
      %s30 = scalar_select %p29, 0, %s28
      %s31 = sadd.s32 1, %s22
      %s32 = scalar_select %p29, %s31, %s22
      %p33 = scmp.ge.s32.totalorder %s32, 2
      %s34 = scalar_select %p33, 0, %s32
      %s36 = sadd.s32 %s35, 1
      %p39 = scmp.eq.s32.totalorder %s15, 3
      %p40 = scmp.ne.s32.totalorder %s35, %s37
      %p41 = scmp.eq.s32.totalorder %s15, 0
      %p42 = por %p40, %p41
      %p43 = scmp.ne.s32.totalorder %s35, %s37
      %p44 = scmp.eq.s32.totalorder %s20, 3
      %p45 = por %p43, %p44
      %p46 = scmp.ne.s32.totalorder %s37, %s38
      %p47 = scmp.eq.s32.totalorder %s20, 0
      %p48 = por %p46, %p47
      %p49 = scmp.ne.s32.totalorder %s37, %s38
      %p50 = scmp.eq.s32.totalorder %s21, 3
      %p51 = por %p49, %p50
      %p53 = scmp.ne.s32.totalorder %s38, %s52
      %p54 = scmp.eq.s32.totalorder %s21, 0
      %p55 = por %p53, %p54
      %s56 = ssub.s32 %s22, %s34
      %s57 = ssub.s32 %s23, %s30
      %s58 = sor.u32 %s56, %s57
      %p59 = scmp.eq.s32.totalorder %s58, 0
      %s61 = sadd.s32 %s60, 1
      %s62 = scalar_select %p59, %s60, %s61
      %p65 = pneg %p59
      %p66 = scmp.eq.s32.totalorder %s15, 3
      %p67 = por %p65, %p66
      %p68 = scmp.ne.s32.totalorder %s60, %s63
      %p69 = scmp.eq.s32.totalorder %s15, 0
      %p70 = por %p68, %p69
      %p71 = scmp.ne.s32.totalorder %s60, %s63
      %p72 = scmp.eq.s32.totalorder %s20, 3
      %p73 = por %p71, %p72
      %p74 = scmp.ne.s32.totalorder %s63, %s64
      %p75 = scmp.eq.s32.totalorder %s20, 0
      %p76 = por %p74, %p75
      %p77 = scmp.ne.s32.totalorder %s63, %s64
      %p78 = scmp.eq.s32.totalorder %s21, 3
      %p79 = por %p77, %p78
      %p81 = scmp.ne.s32.totalorder %s64, %s80
      %p82 = scmp.eq.s32.totalorder %s21, 0
      %p83 = por %p81, %p82
      %s84 = ssub.s32 %s22, %s34
      %s85 = ssub.s32 %s23, %s30
      %s86 = sor.u32 %s84, %s85
      %p87 = scmp.eq.s32.totalorder %s86, 0
      %s89 = sadd.s32 %s88, 1
      %s90 = scalar_select %p87, %s88, %s89
      %p93 = pneg %p87
      %p94 = scmp.eq.s32.totalorder %s15, 3
      %p95 = por %p93, %p94
      %p96 = scmp.ne.s32.totalorder %s88, %s91
      %p97 = scmp.eq.s32.totalorder %s15, 0
      %p98 = por %p96, %p97
      %p99 = scmp.ne.s32.totalorder %s88, %s91
      %p100 = scmp.eq.s32.totalorder %s20, 3
      %p101 = por %p99, %p100
      %p102 = scmp.ne.s32.totalorder %s91, %s92
      %p103 = scmp.eq.s32.totalorder %s20, 0
      %p104 = por %p102, %p103
      %p105 = scmp.ne.s32.totalorder %s91, %s92
      %p106 = scmp.eq.s32.totalorder %s21, 3
      %p107 = por %p105, %p106
      %p109 = scmp.ne.s32.totalorder %s92, %s108
      %p110 = scmp.eq.s32.totalorder %s21, 0
      %p111 = por %p109, %p110
      %s112 = ssub.s32 %s22, %s34
      %p113 = scmp.eq.s32.totalorder %s112, 0
      %s115 = sadd.s32 %s114, 1
      %s116 = scalar_select %p113, %s114, %s115
      %p119 = pneg %p113
      %p120 = scmp.eq.s32.totalorder %s15, 3
      %p121 = por %p119, %p120
      %p122 = scmp.ne.s32.totalorder %s114, %s117
      %p123 = scmp.eq.s32.totalorder %s15, 0
      %p124 = por %p122, %p123
      %p125 = scmp.ne.s32.totalorder %s114, %s117
      %p126 = scmp.eq.s32.totalorder %s20, 3
      %p127 = por %p125, %p126
      %p128 = scmp.ne.s32.totalorder %s117, %s118
      %p129 = scmp.eq.s32.totalorder %s20, 0
      %p130 = por %p128, %p129
      %p131 = scmp.ne.s32.totalorder %s117, %s118
      %p132 = scmp.eq.s32.totalorder %s21, 3
      %p133 = por %p131, %p132
      %p135 = scmp.ne.s32.totalorder %s118, %s134
      %p136 = scmp.eq.s32.totalorder %s21, 0
      %p137 = por %p135, %p136
      %p138 = scmp.le.s32.totalorder 1, %s15
      %p139 = scmp.lt.s32.totalorder %s15, 5
      %p140 = pnand %p138, %p139
      %p141 = pneg %p140
      // Predicated region
      $region9: #{tpu_custom_call.1} parent=5 // pred_check
        _
      $region10: #{tpu_custom_call.1} parent=5 // pred_check_branch
        %143 = sbr.rel (%p140) target = $region12
      $region11: #{tpu_custom_call.1} parent=5 // pred_region
        %s144 = ssub.s32 %s15, 1
        // Predicated region
        $region13: #{tpu_custom_call.1} parent=11 // pred_check
          %p145 = pneg %p48
        $region14: #{tpu_custom_call.1} parent=11 // pred_check_branch
          %147 = sbr.rel (%p145) target = $region16
        $region15: #{tpu_custom_call.1} parent=11 // pred_region
          _
        $region16: #{tpu_custom_call.1} parent=11 // pred_fallthru
          _
      $region12: #{tpu_custom_call.1} parent=5 // pred_fallthru
        _
      %p148 = scmp.lt.s32.totalorder %s15, 4
      // Predicated region
      $region17: #{tpu_custom_call.1} parent=5 // pred_check
        %p149 = pneg %p148
      $region18: #{tpu_custom_call.1} parent=5 // pred_check_branch
        %151 = sbr.rel (%p149) target = $region20
      $region19: #{tpu_custom_call.1} parent=5 // pred_region
        // Predicated region
        $region21: #{tpu_custom_call.1} parent=19 // pred_check
          %p152 = pneg %p70
        $region22: #{tpu_custom_call.1} parent=19 // pred_check_branch
          %154 = sbr.rel (%p152) target = $region24
        $region23: #{tpu_custom_call.1} parent=19 // pred_region
          %s155 = sand.u32 %s60, 1
          %s156 = scalar_lea.sflag [#allocation3], %s155
          %s157 = sand.u32 %s60, 1
          %s158 = smul.addr %s157, 4
          %s159 = scalar_lea.vmem [#allocation2], %s158
          %161 = vsyncadd %s156, 0
          %s162 = smul.addr %s22, 2
          %s163 = sadd.s32 %s23, %s162
          %s164 = smul.addr %s163, 4
          %s165 = scalar_lea.hbm %s1, %s164
          %s167 = sshll.u32 %s165, 4
          %s168 = int_to_ptr.hbm [resolvable:$true] %s167
          %s169 = sshll.u32 %s159, 4
          %s170 = int_to_ptr.vmem [resolvable:$true] %s169
          %172 = dma.hbm_to_vmem [thread:$0]  %s168, 64, %s170, %s156
        $region24: #{tpu_custom_call.1} parent=19 // pred_fallthru
          _
        // Predicated region
        $region25: #{tpu_custom_call.1} parent=19 // pred_check
          %p173 = pneg %p98
        $region26: #{tpu_custom_call.1} parent=19 // pred_check_branch
          %175 = sbr.rel (%p173) target = $region28
        $region27: #{tpu_custom_call.1} parent=19 // pred_region
          %p176 = scmp.lt.s32.totalorder %s22, 1
          %s177 = scalar_select %p176, %s22, 1
          %p178 = scmp.lt.s32.totalorder %s23, 1
          %s179 = scalar_select %p178, %s23, 1
          %s180 = smul.addr %s177, 2
          %s181 = sadd.s32 %s179, %s180
          %s182 = scalar_lea.vmem %s2, %s181
        $region28: #{tpu_custom_call.1} parent=19 // pred_fallthru
          _
      $region20: #{tpu_custom_call.1} parent=5 // pred_fallthru
        _
      %p183 = scmp.le.s32.totalorder 1, %s15
      %p184 = scmp.lt.s32.totalorder %s15, 5
      %p185 = pnand %p183, %p184
      %p186 = pneg %p185
      // Predicated region
      $region29: #{tpu_custom_call.1} parent=5 // pred_check
        _
      $region30: #{tpu_custom_call.1} parent=5 // pred_check_branch
        %188 = sbr.rel (%p185) target = $region32
      $region31: #{tpu_custom_call.1} parent=5 // pred_region
        %s189 = ssub.s32 %s15, 1
        %s190 = sand.u32 %s63, 1
        %s191 = scalar_lea.sflag [#allocation3], %s190
        %s192 = sand.u32 %s63, 1
        %s193 = smul.addr %s192, 4
        %s194 = scalar_lea.vmem [#allocation2], %s193
        // Predicated region
        $region33: #{tpu_custom_call.1} parent=31 // pred_check
          %p195 = pneg %p76
        $region34: #{tpu_custom_call.1} parent=31 // pred_check_branch
          %197 = sbr.rel (%p195) target = $region36
        $region35: #{tpu_custom_call.1} parent=31 // pred_region
          %199 = dma.done %s191, 64
        $region36: #{tpu_custom_call.1} parent=31 // pred_fallthru
          _
        %p200 = pneg %p48
        %p201 = pneg %p45
        %s202 = sand.u32 %s63, 1
        %s203 = scalar_lea.sflag [#allocation3], %s202
        %s204 = sand.u32 %s63, 1
        %s205 = smul.addr %s204, 4
        %s206 = scalar_lea.vmem [#allocation2], %s205
        %p207 = pneg %p76
        %p208 = pneg %p73
        %p209 = scmp.lt.s32.totalorder %s24, 1
        %s210 = scalar_select %p209, %s24, 1
        %p211 = scmp.lt.s32.totalorder %s25, 1
        %s212 = scalar_select %p211, %s25, 1
        %s213 = smul.addr %s210, 2
        %s214 = sadd.s32 %s212, %s213
        %s215 = scalar_lea.vmem %s2, %s214
        %p216 = pneg %p104
        %p217 = pneg %p101
        %p218 = pneg %p130
        %p219 = pneg %p127
        %s220 = sand.u32 %s117, 1
        %s221 = scalar_lea.sflag [#allocation4], %s220
        %s222 = sand.u32 %s117, 1
        %s223 = scalar_lea.vmem [#allocation5], %s222
        %p224 = scmp.lt.s32.totalorder %s24, 1
        %s225 = scalar_select %p224, %s24, 1
        %p226 = scmp.lt.s32.totalorder %s25, 1
        %s227 = scalar_select %p226, %s25, 1
        %s228 = smul.addr %s225, 2
        %s229 = sadd.s32 %s227, %s228
        %s230 = scalar_lea.vmem %s2, %s229
        %v231 = vld [vmem:[%s0] sm:$0xf]
        %s232 = smul.u32 %s25, 128
        %v233 = vlaneseq
        %v234 = vand.u32 %v233, 127
        %v235 = vstv %s232
        %v236 = vadd.s32 %v235, %v234
        %vm237 = vcmp.lt.s32.totalorder %v236, 256
        %v238 = vld [vmem:[%s194] sm:$0xf]
        %v239 = vld [vmem:[%s230] sm:$0x1]
        %vm240 = vcmask 1043456
        %v241 = vsel %vm240, %v238, -inf
        %v242 = vrot.slane %v241, 4
        %v243 = vmax.f32 %v241, %v242
        %v244 = vrot.slane %v243, 2
        %v245 = vmax.f32 %v243, %v244
        %v246 = vrot.slane %v245, 1
        %v247 = vmax.f32 %v245, %v246
        %v248 = vsub.f32 %v238, %v247
        %v249 = vmul.f32 %v248, 1.442695
        %v250 = vpow.pop %v249
        %v251 = vsel %vm240, %v250, 0.0
        %v252 = vrot.slane %v251, 4
        %v253 = vadd.f32 %v251, %v252
        %v254 = vrot.slane %v253, 2
        %v255 = vadd.f32 %v253, %v254
        %v256 = vrot.slane %v255, 1
        %v257 = vadd.f32 %v255, %v256
        %v258 = vlog2.pop %v257
        %v259 = vmul.f32 %v258, 0.6931472
        %v260 = vlaneseq
        %v261 = vshrl.u32 %v260, 7
        %v262 = vperm.slane %v239, 0
        %vm263 = vcmp.eq.s32.totalorder %v261, %v262
        %v264 = vsel %vm263, %v248, 0.0
        %v265 = vsel %vm240, %v264, 0.0
        %v266 = vrot.slane %v265, 4
        %v267 = vadd.f32 %v265, %v266
        %v268 = vrot.slane %v267, 2
        %v269 = vadd.f32 %v267, %v268
        %v270 = vrot.slane %v269, 1
        %v271 = vadd.f32 %v269, %v270
        %v272 = vsub.f32 %v271, %v259
        %274 = vset.pattern.permute.xlu0 0
        %275 = vperm.xlu0 %274, %v231
        %v276 = vpop.permute.xlu0 %275
        %v278 = vsel %vm263, %v276, 0.0
        %v279 = vsel %vm240, %v278, 0.0
        %v280 = vrot.slane %v279, 4
        %v281 = vadd.f32 %v279, %v280
        %v282 = vrot.slane %v281, 2
        %v283 = vadd.f32 %v281, %v282
        %v284 = vrot.slane %v283, 1
        %v285 = vadd.f32 %v283, %v284
        %v286 = vsub.f32 0.0, %v285
        %v287 = vmul.f32 %v286, %v272
        %v288 = vmul.f32 %v272, 1.442695
        %v289 = vpow.pop %v288
        %v290 = vsub.f32 1.0, %v289
        %v291 = vmax.f32 %v290, 0.0
        %v292 = vmul.f32 %v291, %v291
        %v293 = vmul.f32 %v292, %v287
        %vm294 = vcmp.ne.s32.totalorder %v239, 4294967196
        %vm295 = vmand %vm294, %vm237
        %v296 = vsel %vm295, %v293, 0.0
        %p297 = scmp.eq.s32.totalorder %s25, 0
        // Predicated region
        $region37: #{tpu_custom_call.1} parent=31 // pred_check
          %p298 = pneg %p297
        $region38: #{tpu_custom_call.1} parent=31 // pred_check_branch
          %300 = sbr.rel (%p298) target = $region40
        $region39: #{tpu_custom_call.1} parent=31 // pred_region
          %301 = vst [vmem:[%s223] sm:$0x1] 0.0
        $region40: #{tpu_custom_call.1} parent=31 // pred_fallthru
          _
        %v302 = vld [vmem:[%s223] sm:$0x1]
        %v303 = vadd.f32 %v302, %v296
        %304 = vst [vmem:[%s223] sm:$0x1] %v303
        %s305 = sand.u32 %s117, 1
        %s306 = scalar_lea.sflag [#allocation4], %s305
        %s307 = sand.u32 %s117, 1
        %s308 = scalar_lea.vmem [#allocation5], %s307
        // Predicated region
        $region41: #{tpu_custom_call.1} parent=31 // pred_check
          %p309 = pneg %p127
        $region42: #{tpu_custom_call.1} parent=31 // pred_check_branch
          %311 = sbr.rel (%p309) target = $region44
        $region43: #{tpu_custom_call.1} parent=31 // pred_region
          %313 = vsyncadd %s306, 0
          %s314 = scalar_lea.hbm %s3, %s24
          %s316 = sshll.u32 %s308, 4
          %s317 = int_to_ptr.vmem [resolvable:$true] %s316
          %s318 = sshll.u32 %s314, 4
          %s319 = int_to_ptr.hbm [resolvable:$true] %s318
          %321 = dma.vmem_to_hbm [thread:$0]  %s317, 16, %s319, %s306
        $region44: #{tpu_custom_call.1} parent=31 // pred_fallthru
          _
      $region32: #{tpu_custom_call.1} parent=5 // pred_fallthru
        _
      %p322 = scmp.le.s32.totalorder 2, %s15
      // Predicated region
      $region45: #{tpu_custom_call.1} parent=5 // pred_check
        %p323 = pneg %p322
      $region46: #{tpu_custom_call.1} parent=5 // pred_check_branch
        %325 = sbr.rel (%p323) target = $region48
      $region47: #{tpu_custom_call.1} parent=5 // pred_region
        %s326 = ssub.s32 %s15, 2
        // Predicated region
        $region49: #{tpu_custom_call.1} parent=47 // pred_check
          %p327 = pneg %p133
        $region50: #{tpu_custom_call.1} parent=47 // pred_check_branch
          %329 = sbr.rel (%p327) target = $region52
        $region51: #{tpu_custom_call.1} parent=47 // pred_region
          %s330 = sand.u32 %s118, 1
          %s331 = scalar_lea.sflag [#allocation4], %s330
          %s332 = sand.u32 %s118, 1
          %s333 = scalar_lea.vmem [#allocation5], %s332
          %335 = dma.done %s331, 16
        $region52: #{tpu_custom_call.1} parent=47 // pred_fallthru
          _
      $region48: #{tpu_custom_call.1} parent=5 // pred_fallthru
        _
    $region6: #{tpu_custom_call.1} parent=1 // loop_footer
      %s19 = sadd.s32 1, %s15
    $region7: #{tpu_custom_call.1} parent=1 // loop_footer_branch
      %14 = sbr.rel target = $region3
    $region8: #{tpu_custom_call.1} parent=1 // loop_exit
      _
    %336 = vsyncpa [#allocation3], 1
    %s337 = scalar_lea.sflag [#allocation3], 1
    %338 = vsyncpa %s337, 1
    %339 = vsyncpa [#allocation4], 1
    %s340 = scalar_lea.sflag [#allocation4], 1
    %341 = vsyncpa %s340, 1

</llo_original>
